<compile_context>
chip_gen: v7x
topology: tpu7x:2x2x1
jax: 0.10.0
libtpu: 0.0.40
codegen_flags: <defaults>
</compile_context>

<pallas_src>
import jax
import jax.numpy as jnp
from jax.experimental import pallas as pl
from jax.experimental.pallas import tpu as pltpu

_LANE = 128


def _round_up(x, m):
    return (x + m - 1) // m * m


def _vmem_capacity_bytes():
    # Trace-time hardware query; fall back to the v5e/v6e capacity if the
    # query is unavailable (e.g. interpret mode off-TPU).
    try:
        return int(pltpu.get_tpu_info().vmem_capacity_bytes)
    except Exception:
        return 128 << 20


def prepare_eighth_order_weights(w1, w2, *, use_bf16=False):
    """One-time weight prep: transpose, zero-pad H/D_out to lane multiples, cast.

    w1: [H, D_in], w2: [D_out, H] (PyTorch nn.Linear layout).
    Returns (w1t [D_in, H_p], w2t [H_p, D_out_p], (D_in, H, D_out)).
    Call once and reuse across batches — it is deliberately outside the
    per-call path so the HBM transpose/pad cost is not paid per forward.
    """
    H, D_in = w1.shape
    D_out, H2 = w2.shape
    assert H2 == H, "w2 hidden dim must match w1"
    op_dtype = jnp.bfloat16 if use_bf16 else jnp.float32
    H_p = _round_up(H, _LANE)
    D_out_p = _round_up(D_out, _LANE)
    w1t = jnp.zeros((D_in, H_p), op_dtype).at[:, :H].set(w1.T.astype(op_dtype))
    w2t = jnp.zeros((H_p, D_out_p), op_dtype).at[:H, :D_out].set(
        w2.T.astype(op_dtype))
    return w1t, w2t, (D_in, H, D_out)


# ---------------------------------------------------------------------------
# Kernel bodies.  All share the same math:
#   h   = x_tile @ W1t[:, hj]          (MXU, f32 accumulate)
#   h8  = ((h*h)*(h*h))**2 via repeated squaring (VPU, f32)
#   out += h8 @ W2t[hj, :]             (MXU, f32 accumulate)
# ---------------------------------------------------------------------------
def _pow8_contrib(x_ref, w1t_ref, w2t_ref):
    h = jnp.dot(x_ref[...].astype(w1t_ref.dtype), w1t_ref[...],
                preferred_element_type=jnp.float32)
    h2 = h * h
    h4 = h2 * h2
    h8 = h4 * h4
    return jnp.dot(h8.astype(w2t_ref.dtype), w2t_ref[...],
                   preferred_element_type=jnp.float32)


def _kernel_single(x_ref, w1t_ref, w2t_ref, o_ref):
    """num_h == 1: single hidden tile, store directly."""
    o_ref[...] = _pow8_contrib(x_ref, w1t_ref, w2t_ref).astype(o_ref.dtype)


def _kernel_acc_into_out(x_ref, w1t_ref, w2t_ref, o_ref):
    """num_h > 1, f32 output: accumulate directly into the resident out tile."""
    j = pl.program_id(1)
    contrib = _pow8_contrib(x_ref, w1t_ref, w2t_ref)

    @pl.when(j == 0)
    def _init():
        o_ref[...] = contrib

    @pl.when(j > 0)
    def _acc():
        o_ref[...] += contrib


def _kernel_acc_scratch(x_ref, w1t_ref, w2t_ref, o_ref, acc_ref):
    """num_h > 1, non-f32 output: f32 scratch accumulator + finalize cast."""
    j = pl.program_id(1)

    @pl.when(j == 0)
    def _init():
        acc_ref[...] = jnp.zeros_like(acc_ref)

    acc_ref[...] += _pow8_contrib(x_ref, w1t_ref, w2t_ref)

    @pl.when(j == pl.num_programs(1) - 1)
    def _finalize():
        o_ref[...] = acc_ref[...].astype(o_ref.dtype)


# ---------------------------------------------------------------------------
# Wrapper
# ---------------------------------------------------------------------------
def eighth_order_net_prepared(x, w1t, w2t, dims, *, tile_n=None, tile_h=None,
                              x_buffers=None, out_dtype=None):
    """Forward pass with pre-prepared weights.

    x:    [N, D_in]  (any float dtype; pass bf16 x to halve activation HBM
                      traffic when the weights were prepared with use_bf16).
    w1t:  [D_in, H_p], w2t: [H_p, D_out_p]  from prepare_eighth_order_weights.
    """
    D_in, H, D_out = dims
    N, d = x.shape
    assert d == D_in, "x feature dim must match W1"
    d2, H_p = w1t.shape
    H_p2, D_out_p = w2t.shape
    assert d2 == D_in and H_p2 == H_p
    assert H_p % _LANE == 0 and D_out_p % _LANE == 0

    op_dtype = w1t.dtype
    out_dtype = jnp.dtype(x.dtype) if out_dtype is None else jnp.dtype(out_dtype)
    x_item = jnp.dtype(x.dtype).itemsize
    op_item = jnp.dtype(op_dtype).itemsize

    # --- generation-aware tiling ------------------------------------------
    vmem_cap = _vmem_capacity_bytes()
    small_vmem = vmem_cap <= (64 << 20)          # v7x-class TensorCore
    budget = max(vmem_cap - (24 << 20), vmem_cap // 2)
    x_bufs = int(x_buffers) if x_buffers else 2

    if tile_n is None:
        # 256-row tiles on v7x keep >=2 batch tiles (2 TCs) for N >= 512 while
        # halving the working set; 512 on v5e/v6e minimizes grid steps.
        base_n = 256 if small_vmem else 512
        tile_n = min(base_n, _round_up(N, _LANE))
    tile_n = max(16, _round_up(int(tile_n), 16))     # sublane alignment (bf16-safe)

    def vmem_est(tn, th):
        return (x_bufs * tn * D_in * x_item          # x pipeline buffers
                + 2 * D_in * th * op_item            # w1t block (pipelined)
                + 2 * th * D_out_p * op_item         # w2t block (pipelined)
                + 2 * tn * D_out_p * 4               # out tile (f32 worst case)
                + tn * D_out_p * 4                   # possible acc scratch
                + 2 * tn * th * 4                    # h / h8 temporaries
                + tn * th * op_item)                 # h8 cast buffer

    if tile_h is None:
        cap_h = H_p if not small_vmem else min(H_p, 4 * _LANE)
    else:
        cap_h = min(_round_up(int(tile_h), _LANE), H_p)
    # candidate hidden tiles: multiples of 128 that divide H_p, descending
    cands = [d for d in range(H_p, 0, -_LANE) if H_p % d == 0 and d <= cap_h]
    if not cands:
        cands = [_LANE]
    tile_h = cands[-1]
    for d in cands:
        if vmem_est(tile_n, d) <= budget:
            tile_h = d
            break
    while vmem_est(tile_n, tile_h) > budget and tile_n > 128:
        tile_n = max(128, _round_up(tile_n // 2, _LANE))

    num_n = pl.cdiv(N, tile_n)      # partial last batch tile is fine: garbage
    num_h = H_p // tile_h           # rows only affect rows never written back

    # --- kernel variant -----------------------------------------------------
    is_f32_out = (out_dtype == jnp.dtype(jnp.float32))
    if num_h == 1:
        kernel, scratch = _kernel_single, []
    elif is_f32_out:
        kernel, scratch = _kernel_acc_into_out, []
    else:
        kernel = _kernel_acc_scratch
        scratch = [pltpu.VMEM((tile_n, D_out_p), jnp.float32)]

    x_kwargs = {}
    if x_buffers:
        # opt-in deeper x pipelining for DMA-latency-bound tiny shapes
        x_kwargs = dict(pipeline_mode=pl.Buffered(int(x_buffers)))

    vmem_limit = int(min(max(vmem_est(tile_n, tile_h) + (4 << 20), 32 << 20),
                         vmem_cap - (8 << 20)))

    y_p = pl.pallas_call(
        kernel,
        out_shape=jax.ShapeDtypeStruct((N, D_out_p), out_dtype),
        grid_spec=pltpu.PrefetchScalarGridSpec(
            num_scalar_prefetch=0,
            grid=(num_n, num_h),
            in_specs=[
                # x: last block dim == full D_in (no padded HBM copy)
                pl.BlockSpec((tile_n, D_in), lambda i, j: (i, 0), **x_kwargs),
                # weights: lane-dense padded, constant in i (fetched once/tile)
                pl.BlockSpec((D_in, tile_h), lambda i, j: (0, j)),
                pl.BlockSpec((tile_h, D_out_p), lambda i, j: (j, 0)),
            ],
            out_specs=pl.BlockSpec((tile_n, D_out_p), lambda i, j: (i, 0)),
            scratch_shapes=scratch,
        ),
        compiler_params=pltpu.CompilerParams(
            dimension_semantics=("parallel", "arbitrary"),
            vmem_limit_bytes=vmem_limit,
        ),
    )(x, w1t, w2t)

    return y_p[:, :D_out]


def eighth_order_net(x, w1, w2, *, use_bf16=False, **kwargs):
    """Single-shot convenience wrapper (prepares weights on every call).

    For repeated forward passes, call prepare_eighth_order_weights once and
    use eighth_order_net_prepared directly.
    """
    w1t, w2t, dims = prepare_eighth_order_weights(w1, w2, use_bf16=use_bf16)
    return eighth_order_net_prepared(x, w1t, w2t, dims, **kwargs)


# TODO(synk): the module's self.tanh (nn.Tanh) is declared but never used in
# forward, so it is intentionally not implemented.

if __name__ == "__main__":
    # Small shapes consistent with the module: D_in=32, H=256, D_out=16.
    # tile_n=256 / tile_h=128 give a (2, 2) grid: a 2-step parallel batch axis
    # (megacore-shardable) and a 2-step hidden reduction axis, exercising both
    # accumulation variants below.
    N, D_in, H, D_out = 512, 32, 256, 16

    key = jax.random.PRNGKey(0)
    kx, k1, k2 = jax.random.split(key, 3)

    # Scale kept small so h**8 stays in a sane float32 range.
    x = jax.random.normal(kx, (N, D_in), dtype=jnp.float32)
    w1 = 0.1 * jax.random.normal(k1, (H, D_in), dtype=jnp.float32)
    w2 = 0.1 * jax.random.normal(k2, (D_out, H), dtype=jnp.float32)

    # --- f32 path: weights prepared once; accumulation goes directly into the
    #     VMEM-resident output tile (no scratch, no finalize copy). ---
    w1t, w2t, dims = prepare_eighth_order_weights(w1, w2, use_bf16=False)
    y = eighth_order_net_prepared(x, w1t, w2t, dims, tile_n=256, tile_h=128)
    y = jax.block_until_ready(y)

    y_ref = ((x @ w1.T) ** 8) @ w2.T
    assert y.shape == (N, D_out)
    assert jnp.allclose(y, y_ref, rtol=1e-3, atol=1e-3), "f32 mismatch vs reference"

    # --- bf16 operand path (recommended on all MXU generations incl. v5e):
    #     bf16 x halves activation HBM traffic; pow-8 chain and accumulation
    #     stay f32; bf16 output exercises the scratch-accumulator variant. ---
    w1tb, w2tb, dimsb = prepare_eighth_order_weights(w1, w2, use_bf16=True)
    xb = x.astype(jnp.bfloat16)
    y_b = eighth_order_net_prepared(xb, w1tb, w2tb, dimsb, tile_n=256, tile_h=128)
    y_b = jax.block_until_ready(y_b)

    h_b = jnp.dot(xb, w1.astype(jnp.bfloat16).T,
                  preferred_element_type=jnp.float32)
    y_ref_b = jnp.dot((h_b ** 8).astype(jnp.bfloat16),
                      w2.astype(jnp.bfloat16).T,
                      preferred_element_type=jnp.float32).astype(jnp.bfloat16)
    assert y_b.shape == (N, D_out)
    assert jnp.allclose(y_b.astype(jnp.float32), y_ref_b.astype(jnp.float32),
                        rtol=5e-2, atol=5e-2), "bf16 mismatch vs reference"

    print("KERNEL_OK")
</pallas_src>

<mosaic_0001>
module attributes {stable_mosaic.version = 11 : i64} {
  func.func @_kernel_acc_into_out(%arg0: i32, %arg1: i32, %arg2: memref<256x32xf32, #tpu.memory_space<vmem>>, %arg3: memref<32x128xf32, #tpu.memory_space<vmem>>, %arg4: memref<128x128xf32, #tpu.memory_space<vmem>>, %arg5: memref<256x128xf32, #tpu.memory_space<vmem>>) attributes {dimension_semantics = [#tpu.dimension_semantics<parallel>, #tpu.dimension_semantics<arbitrary>], iteration_bounds = array<i64: 2, 2>, scalar_prefetch = 0 : i64, scratch_operands = 0 : i64, tpu.core_type = #tpu.core_type<tc>, window_params = [{transform_indices = @transform_0, window_bounds = array<i64: 256, 32>}, {transform_indices = @transform_1, window_bounds = array<i64: 32, 128>}, {transform_indices = @transform_2, window_bounds = array<i64: 128, 128>}, {transform_indices = @transform_3, window_bounds = array<i64: 256, 128>}]} {
    %c0 = arith.constant 0 : index
    %c0_0 = arith.constant 0 : index
    %0 = vector.load %arg2[%c0, %c0_0] : memref<256x32xf32, #tpu.memory_space<vmem>>, vector<256x32xf32>
    %c0_1 = arith.constant 0 : index
    %c0_2 = arith.constant 0 : index
    %1 = vector.load %arg3[%c0_1, %c0_2] : memref<32x128xf32, #tpu.memory_space<vmem>>, vector<32x128xf32>
    %cst = arith.constant dense<0.000000e+00> : vector<256x128xf32>
    %2 = tpu.matmul %0, %1, %cst {dimension_numbers = #tpu.dot_dimension_numbers<[1], [0], [0], [1], [0, 0, 1, 1], [], []>} : vector<256x32xf32>, vector<32x128xf32>, vector<256x128xf32> -> vector<256x128xf32>
    %3 = arith.mulf %2, %2 : vector<256x128xf32>
    %4 = arith.mulf %3, %3 : vector<256x128xf32>
    %5 = arith.mulf %4, %4 : vector<256x128xf32>
    %c0_3 = arith.constant 0 : index
    %c0_4 = arith.constant 0 : index
    %6 = vector.load %arg4[%c0_3, %c0_4] : memref<128x128xf32, #tpu.memory_space<vmem>>, vector<128x128xf32>
    %cst_5 = arith.constant dense<0.000000e+00> : vector<256x128xf32>
    %7 = tpu.matmul %5, %6, %cst_5 {dimension_numbers = #tpu.dot_dimension_numbers<[1], [0], [0], [1], [0, 0, 1, 1], [], []>} : vector<256x128xf32>, vector<128x128xf32>, vector<256x128xf32> -> vector<256x128xf32>
    %c0_i32 = arith.constant 0 : i32
    %8 = arith.cmpi eq, %arg1, %c0_i32 : i32
    %9 = arith.extui %8 : i1 to i32
    %c0_i32_6 = arith.constant 0 : i32
    %10 = arith.cmpi ne, %9, %c0_i32_6 : i32
    scf.if %10 {
      %c0_9 = arith.constant 0 : index
      %c0_10 = arith.constant 0 : index
      %14 = vector.load %arg5[%c0_9, %c0_10] : memref<256x128xf32, #tpu.memory_space<vmem>>, vector<256x128xf32>
      tpu.vector_store %arg5[%c0_9, %c0_10], %7 {strides = array<i32>} : memref<256x128xf32, #tpu.memory_space<vmem>>, vector<256x128xf32>,
    } else {
    }
    %c0_i32_7 = arith.constant 0 : i32
    %11 = arith.cmpi sgt, %arg1, %c0_i32_7 : i32
    %12 = arith.extui %11 : i1 to i32
    %c0_i32_8 = arith.constant 0 : i32
    %13 = arith.cmpi ne, %12, %c0_i32_8 : i32
    scf.if %13 {
      %c0_9 = arith.constant 0 : index
      %c0_10 = arith.constant 0 : index
      %14 = vector.load %arg5[%c0_9, %c0_10] : memref<256x128xf32, #tpu.memory_space<vmem>>, vector<256x128xf32>
      %15 = arith.addf %14, %7 : vector<256x128xf32>
      %c0_11 = arith.constant 0 : index
      %c0_12 = arith.constant 0 : index
      %16 = vector.load %arg5[%c0_11, %c0_12] : memref<256x128xf32, #tpu.memory_space<vmem>>, vector<256x128xf32>
      tpu.vector_store %arg5[%c0_11, %c0_12], %15 {strides = array<i32>} : memref<256x128xf32, #tpu.memory_space<vmem>>, vector<256x128xf32>,
    } else {
    }
    return
  }
  func.func @transform_0(%arg0: i32, %arg1: i32) -> (i32, i32) {
    %c0_i32 = arith.constant 0 : i32
    %c0_i32_0 = arith.constant 0 : i32
    return %arg0, %c0_i32 : i32, i32
  }
  func.func @transform_1(%arg0: i32, %arg1: i32) -> (i32, i32) {
    %c0_i32 = arith.constant 0 : i32
    %c0_i32_0 = arith.constant 0 : i32
    return %c0_i32, %arg1 : i32, i32
  }
  func.func @transform_2(%arg0: i32, %arg1: i32) -> (i32, i32) {
    %c0_i32 = arith.constant 0 : i32
    %c0_i32_0 = arith.constant 0 : i32
    return %arg1, %c0_i32 : i32, i32
  }
  func.func @transform_3(%arg0: i32, %arg1: i32) -> (i32, i32) {
    %c0_i32 = arith.constant 0 : i32
    %c0_i32_0 = arith.constant 0 : i32
    return %arg0, %c0_i32 : i32, i32
  }
}

</mosaic_0001>

<llo_original>
// kernel: tpu_custom_call.1
$region0: #{tpu_custom_call.1}
  #allocation0 [shape = 'u32[]', space=smem, size = 0x4, offset = 0x4, fixed_abs, tag = 'smem constant byte address 0x4 - core index']
  #allocation1 [shape = 'u32[144,128]{1,0:T(1,128)}', space=vmem, size = 0x12000, scoped, tag = 'internal scratch']
  %s0 = inlined_call_operand.vmem [shape: f32[512,32], index: 0, kind: input, shape index: {}]
  %s1 = inlined_call_operand.vmem [shape: f32[32,256], index: 1, kind: input, shape index: {}]
  %s2 = inlined_call_operand.vmem [shape: f32[256,128], index: 2, kind: input, shape index: {}]
  %s3 = inlined_call_operand.hbm [shape: f32[512,128], index: 3, kind: output, shape index: {}]
  %s4 = sld [smem:[#allocation0]]
  $region91: #{tpu_custom_call.1} parent=0
    _
  %s6 = ssub.s32 1, %s4
  %s7 = scalar_select 0, %s6, %s4
  $region1: #{tpu_custom_call.1} parent=0
    #allocation2 [shape = 'u8[32768]{0}', space=vmem, size = 0x8000, scoped, tag = 'input window, operand 1']
    #allocation3 [shape = 'u8[262144]{0}', space=vmem, size = 0x40000, scoped, tag = 'output window, operand 0']
    #allocation4 [shape = 's32[2]{0}', space=sflag, size = 0x8, scoped, tag = 'scoped memory for tpu_custom_call.1']
    %8 = vsyncpa [#allocation4], 0
    %s9 = scalar_lea.sflag [#allocation4], 1
    %10 = vsyncpa %s9, 0
    loop: start=0, step=1, limit=6
    $region2: #{tpu_custom_call.1} parent=1 // loop_pre_header
      _
    $region3: #{tpu_custom_call.1} parent=1 // loop_header
      %s12 = sphi 0, %s16
      %p13 = scmp.ge.s32.totalorder %s12, 6
      %s19 = sphi 0, %s31
      %s20 = sphi 0, %s27
      %s21 = sphi 0, %s19
      %s22 = sphi 0, %s20
      %s23 = sphi 0, %s21
      %s24 = sphi 0, %s22
      %s34 = sphi 0, %s36
      %s37 = sphi 0, %s34
      %s38 = sphi 0, %s37
      %s54 = sphi 0, %s38
      %s60 = sphi 0, %s62
      %s63 = sphi 0, %s60
      %s64 = sphi 0, %s63
      %s80 = sphi 0, %s64
      %s86 = sphi 0, %s88
      %s89 = sphi 0, %s86
      %s90 = sphi 0, %s89
      %s106 = sphi 0, %s90
      %s112 = sphi 0, %s114
      %s115 = sphi 0, %s112
      %s116 = sphi 0, %s115
      %s132 = sphi 0, %s116
    $region4: #{tpu_custom_call.1} parent=1 // loop_header_branch
      %15 = sbr.rel (%p13) target = $region8
    $region5: #{tpu_custom_call.1} parent=1 // loop_body
      %s17 = ssub.s32 %s12, 1
      %s18 = ssub.s32 %s12, 2
      %s25 = sadd.s32 1, %s20
      %p26 = scmp.ge.s32.totalorder %s25, 2
      %s27 = scalar_select %p26, 0, %s25
      %s28 = sadd.s32 1, %s19
      %s29 = scalar_select %p26, %s28, %s19
      %p30 = scmp.ge.s32.totalorder %s29, 2
      %s31 = scalar_select %p30, 0, %s29
      %s32 = ssub.s32 %s19, %s31
      %p33 = scmp.eq.s32.totalorder %s32, 0
      %s35 = sadd.s32 %s34, 1
      %s36 = scalar_select %p33, %s34, %s35
      %p39 = pneg %p33
      %p40 = scmp.eq.s32.totalorder %s12, 3
      %p41 = por %p39, %p40
      %p42 = scmp.ne.s32.totalorder %s34, %s37
      %p43 = scmp.eq.s32.totalorder %s12, 0
      %p44 = por %p42, %p43
      %p45 = scmp.ne.s32.totalorder %s34, %s37
      %p46 = scmp.eq.s32.totalorder %s17, 3
      %p47 = por %p45, %p46
      %p48 = scmp.ne.s32.totalorder %s37, %s38
      %p49 = scmp.eq.s32.totalorder %s17, 0
      %p50 = por %p48, %p49
      %p51 = scmp.ne.s32.totalorder %s37, %s38
      %p52 = scmp.eq.s32.totalorder %s18, 3
      %p53 = por %p51, %p52
      %p55 = scmp.ne.s32.totalorder %s38, %s54
      %p56 = scmp.eq.s32.totalorder %s18, 0
      %p57 = por %p55, %p56
      %s58 = ssub.s32 %s20, %s27
      %p59 = scmp.eq.s32.totalorder %s58, 0
      %s61 = sadd.s32 %s60, 1
      %s62 = scalar_select %p59, %s60, %s61
      %p65 = pneg %p59
      %p66 = scmp.eq.s32.totalorder %s12, 3
      %p67 = por %p65, %p66
      %p68 = scmp.ne.s32.totalorder %s60, %s63
      %p69 = scmp.eq.s32.totalorder %s12, 0
      %p70 = por %p68, %p69
      %p71 = scmp.ne.s32.totalorder %s60, %s63
      %p72 = scmp.eq.s32.totalorder %s17, 3
      %p73 = por %p71, %p72
      %p74 = scmp.ne.s32.totalorder %s63, %s64
      %p75 = scmp.eq.s32.totalorder %s17, 0
      %p76 = por %p74, %p75
      %p77 = scmp.ne.s32.totalorder %s63, %s64
      %p78 = scmp.eq.s32.totalorder %s18, 3
      %p79 = por %p77, %p78
      %p81 = scmp.ne.s32.totalorder %s64, %s80
      %p82 = scmp.eq.s32.totalorder %s18, 0
      %p83 = por %p81, %p82
      %s84 = ssub.s32 %s20, %s27
      %p85 = scmp.eq.s32.totalorder %s84, 0
      %s87 = sadd.s32 %s86, 1
      %s88 = scalar_select %p85, %s86, %s87
      %p91 = pneg %p85
      %p92 = scmp.eq.s32.totalorder %s12, 3
      %p93 = por %p91, %p92
      %p94 = scmp.ne.s32.totalorder %s86, %s89
      %p95 = scmp.eq.s32.totalorder %s12, 0
      %p96 = por %p94, %p95
      %p97 = scmp.ne.s32.totalorder %s86, %s89
      %p98 = scmp.eq.s32.totalorder %s17, 3
      %p99 = por %p97, %p98
      %p100 = scmp.ne.s32.totalorder %s89, %s90
      %p101 = scmp.eq.s32.totalorder %s17, 0
      %p102 = por %p100, %p101
      %p103 = scmp.ne.s32.totalorder %s89, %s90
      %p104 = scmp.eq.s32.totalorder %s18, 3
      %p105 = por %p103, %p104
      %p107 = scmp.ne.s32.totalorder %s90, %s106
      %p108 = scmp.eq.s32.totalorder %s18, 0
      %p109 = por %p107, %p108
      %s110 = ssub.s32 %s19, %s31
      %p111 = scmp.eq.s32.totalorder %s110, 0
      %s113 = sadd.s32 %s112, 1
      %s114 = scalar_select %p111, %s112, %s113
      %p117 = pneg %p111
      %p118 = scmp.eq.s32.totalorder %s12, 3
      %p119 = por %p117, %p118
      %p120 = scmp.ne.s32.totalorder %s112, %s115
      %p121 = scmp.eq.s32.totalorder %s12, 0
      %p122 = por %p120, %p121
      %p123 = scmp.ne.s32.totalorder %s112, %s115
      %p124 = scmp.eq.s32.totalorder %s17, 3
      %p125 = por %p123, %p124
      %p126 = scmp.ne.s32.totalorder %s115, %s116
      %p127 = scmp.eq.s32.totalorder %s17, 0
      %p128 = por %p126, %p127
      %p129 = scmp.ne.s32.totalorder %s115, %s116
      %p130 = scmp.eq.s32.totalorder %s18, 3
      %p131 = por %p129, %p130
      %p133 = scmp.ne.s32.totalorder %s116, %s132
      %p134 = scmp.eq.s32.totalorder %s18, 0
      %p135 = por %p133, %p134
      %p136 = scmp.le.s32.totalorder 1, %s12
      %p137 = scmp.lt.s32.totalorder %s12, 5
      %p138 = pnand %p136, %p137
      %p139 = pneg %p138
      // Predicated region
      $region9: #{tpu_custom_call.1} parent=5 // pred_check
        _
      $region10: #{tpu_custom_call.1} parent=5 // pred_check_branch
        %141 = sbr.rel (%p138) target = $region12
      $region11: #{tpu_custom_call.1} parent=5 // pred_region
        %s142 = ssub.s32 %s12, 1
      $region12: #{tpu_custom_call.1} parent=5 // pred_fallthru
        _
      %p143 = scmp.lt.s32.totalorder %s12, 4
      // Predicated region
      $region13: #{tpu_custom_call.1} parent=5 // pred_check
        %p144 = pneg %p143
      $region14: #{tpu_custom_call.1} parent=5 // pred_check_branch
        %146 = sbr.rel (%p144) target = $region16
      $region15: #{tpu_custom_call.1} parent=5 // pred_region
        // Predicated region
        $region17: #{tpu_custom_call.1} parent=15 // pred_check
          %p147 = pneg %p44
        $region18: #{tpu_custom_call.1} parent=15 // pred_check_branch
          %149 = sbr.rel (%p147) target = $region20
        $region19: #{tpu_custom_call.1} parent=15 // pred_region
          %s150 = smul.u32 32, %s19
          %p151 = scmp.lt.s32.totalorder %s150, 63
          %s152 = scalar_select %p151, %s150, 63
          %s153 = smul.addr %s152, 8
          %s154 = scalar_lea.vmem %s0, %s153
          %s155 = smul.u32 32, %s19
        $region20: #{tpu_custom_call.1} parent=15 // pred_fallthru
          _
        // Predicated region
        $region21: #{tpu_custom_call.1} parent=15 // pred_check
          %p156 = pneg %p70
        $region22: #{tpu_custom_call.1} parent=15 // pred_check_branch
          %158 = sbr.rel (%p156) target = $region24
        $region23: #{tpu_custom_call.1} parent=15 // pred_region
          %s159 = sand.u32 %s60, 1
          %s160 = sand.u32 %s60, 1
          %s161 = smul.addr %s160, 32
          %s162 = scalar_lea.vmem [#allocation2], %s161
          %s163 = smul.addr %s20, 8
          %s164 = scalar_lea.vmem %s1, %s163
          // Predicated region
          $region25: #{tpu_custom_call.1} parent=23 // pred_check
            _
          $region26: #{tpu_custom_call.1} parent=23 // pred_check_branch
            %166 = sbr.rel (0) target = $region28
          $region27: #{tpu_custom_call.1} parent=23 // pred_region
            // Predicated region
            $region29: #{tpu_custom_call.1} parent=27 // pred_check
              _
            $region30: #{tpu_custom_call.1} parent=27 // pred_check_branch
              %168 = sbr.rel (0) target = $region32
            $region31: #{tpu_custom_call.1} parent=27 // pred_region
              // Predicated region
              $region44: #{tpu_custom_call.1} parent=31 // pred_check
                _
              $region45: #{tpu_custom_call.1} parent=31 // pred_check_branch
                %189 = sbr.rel (0) target = $region47
              $region46: #{tpu_custom_call.1} parent=31 // pred_region
                loop: start=0, step=1, limit=1
                $region48: #{tpu_custom_call.1} parent=46 // loop_pre_header
                  _
                $region49: #{tpu_custom_call.1} parent=46 // loop_header
                  %s191 = sphi 0, %s195
                  %p192 = scmp.ge.s32.totalorder %s191, 1
                  %s196 = sphi %s164, %s164
                  %s197 = sphi %s162, %s162
                $region50: #{tpu_custom_call.1} parent=46 // loop_header_branch
                  %194 = sbr.rel (%p192) target = $region54
                $region51: #{tpu_custom_call.1} parent=46 // loop_body
                  %v198 = vld [vmem:[%s196] sm:$0xff]
                  %199 = vst [vmem:[%s197] sm:$0xff] %v198
                  %v200 = vld [vmem:[%s196 + $0x10] sm:$0xff]
                  %201 = vst [vmem:[%s197 + $0x8] sm:$0xff] %v200
                  %v202 = vld [vmem:[%s196 + $0x20] sm:$0xff]
                  %203 = vst [vmem:[%s197 + $0x10] sm:$0xff] %v202
                  %v204 = vld [vmem:[%s196 + $0x30] sm:$0xff]
                  %205 = vst [vmem:[%s197 + $0x18] sm:$0xff] %v204
                $region52: #{tpu_custom_call.1} parent=46 // loop_footer
                  %s195 = sadd.s32 1, %s191
                $region53: #{tpu_custom_call.1} parent=46 // loop_footer_branch
                  %190 = sbr.rel target = $region49
                $region54: #{tpu_custom_call.1} parent=46 // loop_exit
                  _
              $region47: #{tpu_custom_call.1} parent=31 // pred_fallthru
                _
              // Predicated region
              $region55: #{tpu_custom_call.1} parent=31 // pred_check
                _
              $region56: #{tpu_custom_call.1} parent=31 // pred_check_branch
                %207 = sbr.rel target = $region58
              $region57: #{tpu_custom_call.1} parent=31 // pred_region
                _
              $region58: #{tpu_custom_call.1} parent=31 // pred_fallthru
                _
            $region32: #{tpu_custom_call.1} parent=27 // pred_fallthru
              _
            // Predicated region
            $region33: #{tpu_custom_call.1} parent=27 // pred_check
              _
            $region34: #{tpu_custom_call.1} parent=27 // pred_check_branch
              %170 = sbr.rel target = $region36
            $region35: #{tpu_custom_call.1} parent=27 // pred_region
              loop: start=0, step=1, limit=1
              $region37: #{tpu_custom_call.1} parent=35 // loop_pre_header
                _
              $region38: #{tpu_custom_call.1} parent=35 // loop_header
                %s173 = sphi 0, %s177
                %p174 = scmp.ge.s32.totalorder %s173, 1
                %s178 = sphi %s164, %s164
                %s179 = sphi %s162, %s162
              $region39: #{tpu_custom_call.1} parent=35 // loop_header_branch
                %176 = sbr.rel (%p174) target = $region43
              $region40: #{tpu_custom_call.1} parent=35 // loop_body
                %v180 = vld [vmem:[%s178] sm:$0xff]
                %181 = vst [vmem:[%s179] sm:$0xff] %v180
                %v182 = vld [vmem:[%s178 + $0x10] sm:$0xff]
                %183 = vst [vmem:[%s179 + $0x8] sm:$0xff] %v182
                %v184 = vld [vmem:[%s178 + $0x20] sm:$0xff]
                %185 = vst [vmem:[%s179 + $0x10] sm:$0xff] %v184
                %v186 = vld [vmem:[%s178 + $0x30] sm:$0xff]
                %187 = vst [vmem:[%s179 + $0x18] sm:$0xff] %v186
              $region41: #{tpu_custom_call.1} parent=35 // loop_footer
                %s177 = sadd.s32 1, %s173
              $region42: #{tpu_custom_call.1} parent=35 // loop_footer_branch
                %172 = sbr.rel target = $region38
              $region43: #{tpu_custom_call.1} parent=35 // loop_exit
                _
            $region36: #{tpu_custom_call.1} parent=27 // pred_fallthru
              _
          $region28: #{tpu_custom_call.1} parent=23 // pred_fallthru
            _
          %208 = vnop
        $region24: #{tpu_custom_call.1} parent=15 // pred_fallthru
          _
        // Predicated region
        $region59: #{tpu_custom_call.1} parent=15 // pred_check
          %p209 = pneg %p96
        $region60: #{tpu_custom_call.1} parent=15 // pred_check_branch
          %211 = sbr.rel (%p209) target = $region62
        $region61: #{tpu_custom_call.1} parent=15 // pred_region
          %s212 = smul.u32 16, %s20
          %p213 = scmp.lt.s32.totalorder %s212, 31
          %s214 = scalar_select %p213, %s212, 31
          %s215 = smul.addr %s214, 8
          %s216 = scalar_lea.vmem %s2, %s215
          %s217 = smul.u32 16, %s20
        $region62: #{tpu_custom_call.1} parent=15 // pred_fallthru
          _
      $region16: #{tpu_custom_call.1} parent=5 // pred_fallthru
        _
      %p218 = scmp.le.s32.totalorder 1, %s12
      %p219 = scmp.lt.s32.totalorder %s12, 5
      %p220 = pnand %p218, %p219
      %p221 = pneg %p220
      // Predicated region
      $region63: #{tpu_custom_call.1} parent=5 // pred_check
        _
      $region64: #{tpu_custom_call.1} parent=5 // pred_check_branch
        %223 = sbr.rel (%p220) target = $region66
      $region65: #{tpu_custom_call.1} parent=5 // pred_region
        %s224 = ssub.s32 %s12, 1
        %s225 = sand.u32 %s63, 1
        %s226 = sand.u32 %s63, 1
        %s227 = smul.addr %s226, 32
        %s228 = scalar_lea.vmem [#allocation2], %s227
        // Predicated region
        $region67: #{tpu_custom_call.1} parent=65 // pred_check
          %p229 = pneg %p76
        $region68: #{tpu_custom_call.1} parent=65 // pred_check_branch
          %231 = sbr.rel (%p229) target = $region70
        $region69: #{tpu_custom_call.1} parent=65 // pred_region
          _
        $region70: #{tpu_custom_call.1} parent=65 // pred_fallthru
          _
        %s232 = smul.u32 32, %s21
        %p233 = scmp.lt.s32.totalorder %s232, 63
        %s234 = scalar_select %p233, %s232, 63
        %s235 = smul.addr %s234, 8
        %s236 = scalar_lea.vmem %s0, %s235
        %p237 = pneg %p50
        %p238 = pneg %p47
        %s239 = sand.u32 %s63, 1
        %s240 = sand.u32 %s63, 1
        %s241 = smul.addr %s240, 32
        %s242 = scalar_lea.vmem [#allocation2], %s241
        %p243 = pneg %p76
        %p244 = pneg %p73
        %s245 = smul.u32 16, %s22
        %p246 = scmp.lt.s32.totalorder %s245, 31
        %s247 = scalar_select %p246, %s245, 31
        %s248 = smul.addr %s247, 8
        %s249 = scalar_lea.vmem %s2, %s248
        %p250 = pneg %p102
        %p251 = pneg %p99
        %p252 = pneg %p128
        %p253 = pneg %p125
        %s254 = sand.u32 %s115, 1
        %s255 = scalar_lea.sflag [#allocation4], %s254
        %s256 = sand.u32 %s115, 1
        %s257 = smul.addr %s256, 256
        %s258 = scalar_lea.vmem [#allocation3], %s257
        %s259 = smul.u32 32, %s21
        %p260 = scmp.lt.s32.totalorder %s259, 63
        %s261 = scalar_select %p260, %s259, 63
        %s262 = smul.addr %s261, 8
        %s263 = scalar_lea.vmem %s0, %s262
        %s264 = smul.u32 32, %s21
        %s265 = smul.u32 16, %s22
        %p266 = scmp.lt.s32.totalorder %s265, 31
        %s267 = scalar_select %p266, %s265, 31
        %s268 = smul.addr %s267, 8
        %s269 = scalar_lea.vmem %s2, %s268
        %s270 = smul.u32 16, %s22
        %s271 = smul.u32 32, %s21
        %v272 = vld [vmem:[%s263] sm:$0xff]
        %v273 = vld [vmem:[%s263 + $0x8] sm:$0xff]
        %v274 = vld [vmem:[%s263 + $0x10] sm:$0xff]
        %v275 = vld [vmem:[%s263 + $0x18] sm:$0xff]
        %v276 = vld [vmem:[%s263 + $0x20] sm:$0xff]
        %v277 = vld [vmem:[%s263 + $0x28] sm:$0xff]
        %v278 = vld [vmem:[%s263 + $0x30] sm:$0xff]
        %v279 = vld [vmem:[%s263 + $0x38] sm:$0xff]
        %v280 = vld [vmem:[%s263 + $0x40] sm:$0xff]
        %v281 = vld [vmem:[%s263 + $0x48] sm:$0xff]
        %v282 = vld [vmem:[%s263 + $0x50] sm:$0xff]
        %v283 = vld [vmem:[%s263 + $0x58] sm:$0xff]
        %v284 = vld [vmem:[%s263 + $0x60] sm:$0xff]
        %v285 = vld [vmem:[%s263 + $0x68] sm:$0xff]
        %v286 = vld [vmem:[%s263 + $0x70] sm:$0xff]
        %v287 = vld [vmem:[%s263 + $0x78] sm:$0xff]
        %v288 = vld [vmem:[%s263 + $0x80] sm:$0xff]
        %v289 = vld [vmem:[%s263 + $0x88] sm:$0xff]
        %v290 = vld [vmem:[%s263 + $0x90] sm:$0xff]
        %v291 = vld [vmem:[%s263 + $0x98] sm:$0xff]
        %v292 = vld [vmem:[%s263 + $0xa0] sm:$0xff]
        %v293 = vld [vmem:[%s263 + $0xa8] sm:$0xff]
        %v294 = vld [vmem:[%s263 + $0xb0] sm:$0xff]
        %v295 = vld [vmem:[%s263 + $0xb8] sm:$0xff]
        %v296 = vld [vmem:[%s263 + $0xc0] sm:$0xff]
        %v297 = vld [vmem:[%s263 + $0xc8] sm:$0xff]
        %v298 = vld [vmem:[%s263 + $0xd0] sm:$0xff]
        %v299 = vld [vmem:[%s263 + $0xd8] sm:$0xff]
        %v300 = vld [vmem:[%s263 + $0xe0] sm:$0xff]
        %v301 = vld [vmem:[%s263 + $0xe8] sm:$0xff]
        %v302 = vld [vmem:[%s263 + $0xf0] sm:$0xff]
        %v303 = vld [vmem:[%s263 + $0xf8] sm:$0xff]
        %v304 = vld [vmem:[%s228] sm:$0xff]
        %v305 = vld [vmem:[%s228 + $0x8] sm:$0xff]
        %v306 = vld [vmem:[%s228 + $0x10] sm:$0xff]
        %v307 = vld [vmem:[%s228 + $0x18] sm:$0xff]
        %vm308 = vcmask 261120
        %v310 = vsel %vm308, %v272, 0
        %v313 = vsel %vm308, %v273, 0
        %v316 = vsel %vm308, %v274, 0
        %v319 = vsel %vm308, %v275, 0
        %v322 = vsel %vm308, %v276, 0
        %v325 = vsel %vm308, %v277, 0
        %v328 = vsel %vm308, %v278, 0
        %v331 = vsel %vm308, %v279, 0
        %v334 = vsel %vm308, %v280, 0
        %v337 = vsel %vm308, %v281, 0
        %v340 = vsel %vm308, %v282, 0
        %v343 = vsel %vm308, %v283, 0
        %v346 = vsel %vm308, %v284, 0
        %v349 = vsel %vm308, %v285, 0
        %v352 = vsel %vm308, %v286, 0
        %v355 = vsel %vm308, %v287, 0
        %v358 = vsel %vm308, %v288, 0
        %v361 = vsel %vm308, %v289, 0
        %v364 = vsel %vm308, %v290, 0
        %v367 = vsel %vm308, %v291, 0
        %v370 = vsel %vm308, %v292, 0
        %v373 = vsel %vm308, %v293, 0
        %v376 = vsel %vm308, %v294, 0
        %v379 = vsel %vm308, %v295, 0
        %v382 = vsel %vm308, %v296, 0
        %v385 = vsel %vm308, %v297, 0
        %v388 = vsel %vm308, %v298, 0
        %v391 = vsel %vm308, %v299, 0
        %v394 = vsel %vm308, %v300, 0
        %v397 = vsel %vm308, %v301, 0
        %v400 = vsel %vm308, %v302, 0
        %v403 = vsel %vm308, %v303, 0
        %405 = vmatprep.subr.mxu0 0.0
        %406 = vmatpush1.msra.mxu0 %v304
        %407 = vmatprep.subr.mxu0 0.0
        %408 = vmatpush1.msra.mxu0 %v305
        %409 = vmatprep.subr.mxu0 0.0
        %410 = vmatpush1.msra.mxu0 %v306
        %411 = vmatprep.subr.mxu0 0.0
        %412 = vmatpush1.msra.mxu0 %v307
        %413 = vmatprep.subr.mxu0 0.0
        %414 = vmatpush1.msra.mxu0 0.0
        %415 = vmatprep.subr.mxu0 0.0
        %416 = vmatpush1.msra.mxu0 0.0
        %417 = vmatprep.subr.mxu0 0.0
        %418 = vmatpush1.msra.mxu0 0.0
        %419 = vmatprep.subr.mxu0 0.0
        %420 = vmatpush1.msra.mxu0 0.0
        %421 = vmatprep.subr.mxu0 0.0
        %422 = vmatpush1.msra.mxu0 0.0
        %423 = vmatprep.subr.mxu0 0.0
        %424 = vmatpush1.msra.mxu0 0.0
        %425 = vmatprep.subr.mxu0 0.0
        %426 = vmatpush1.msra.mxu0 0.0
        %427 = vmatprep.subr.mxu0 0.0
        %428 = vmatpush1.msra.mxu0 0.0
        %429 = vmatprep.subr.mxu0 0.0
        %430 = vmatpush1.msra.mxu0 0.0
        %431 = vmatprep.subr.mxu0 0.0
        %432 = vmatpush1.msra.mxu0 0.0
        %433 = vmatprep.subr.mxu0 0.0
        %434 = vmatpush1.msra.mxu0 0.0
        %435 = vmatprep.subr.mxu0 0.0
        %436 = vmatpush1.msra.mxu0 0.0
        %437 = vmatprep.subr.mxu0 0.0
        %438 = vmatpush1.msra.mxu0 0.0
        %439 = vmatprep.subr.mxu0 0.0
        %440 = vmatpush1.msra.mxu0 0.0
        %441 = vmatprep.subr.mxu0 0.0
        %442 = vmatpush1.msra.mxu0 0.0
        %443 = vmatprep.subr.mxu0 0.0
        %444 = vmatpush1.msra.mxu0 0.0
        %445 = vmatprep.subr.mxu0 0.0
        %446 = vmatpush1.msra.mxu0 0.0
        %447 = vmatprep.subr.mxu0 0.0
        %448 = vmatpush1.msra.mxu0 0.0
        %449 = vmatprep.subr.mxu0 0.0
        %450 = vmatpush1.msra.mxu0 0.0
        %451 = vmatprep.subr.mxu0 0.0
        %452 = vmatpush1.msra.mxu0 0.0
        %453 = vmatprep.subr.mxu0 0.0
        %454 = vmatpush1.msra.mxu0 0.0
        %455 = vmatprep.subr.mxu0 0.0
        %456 = vmatpush1.msra.mxu0 0.0
        %457 = vmatprep.subr.mxu0 0.0
        %458 = vmatpush1.msra.mxu0 0.0
        %459 = vmatprep.subr.mxu0 0.0
        %460 = vmatpush1.msra.mxu0 0.0
        %461 = vmatprep.subr.mxu0 0.0
        %462 = vmatpush1.msra.mxu0 0.0
        %463 = vmatprep.subr.mxu0 0.0
        %464 = vmatpush1.msra.mxu0 0.0
        %465 = vmatprep.subr.mxu0 0.0
        %466 = vmatpush1.msra.mxu0 0.0
        %467 = vmatprep.subr.mxu0 0.0
        %468 = vmatpush1.msra.mxu0 0.0
        %469 = vmatprep.mubr.f32.mxu0 0.0
        %470 = vmatmul.mubr.f32.gmra.mrb[0].mxu0 %v310
        %v471 = vpop.f32.mrb[0].mxu0
        %v472 = vadd.f32 0.0, %v471
        %v473 = vpop.f32.mrb[0].mxu0
        %474 = vmatprep.mubr.f32.mxu0 0.0
        %475 = vmatmul.mubr.f32.gmra.mrb[0].mxu0 %v313
        %v476 = vpop.f32.mrb[0].mxu0
        %v477 = vadd.f32 0.0, %v476
        %v478 = vpop.f32.mrb[0].mxu0
        %479 = vmatprep.mubr.f32.mxu0 0.0
        %480 = vmatmul.mubr.f32.gmra.mrb[0].mxu0 %v316
        %v481 = vpop.f32.mrb[0].mxu0
        %v482 = vadd.f32 0.0, %v481
        %v483 = vpop.f32.mrb[0].mxu0
        %484 = vmatprep.mubr.f32.mxu0 0.0
        %485 = vmatmul.mubr.f32.gmra.mrb[0].mxu0 %v319
        %v486 = vpop.f32.mrb[0].mxu0
        %v487 = vadd.f32 0.0, %v486
        %v488 = vpop.f32.mrb[0].mxu0
        %489 = vmatprep.mubr.f32.mxu0 0.0
        %490 = vmatmul.mubr.f32.gmra.mrb[0].mxu0 %v322
        %v491 = vpop.f32.mrb[0].mxu0
        %v492 = vadd.f32 0.0, %v491
        %v493 = vpop.f32.mrb[0].mxu0
        %494 = vmatprep.mubr.f32.mxu0 0.0
        %495 = vmatmul.mubr.f32.gmra.mrb[0].mxu0 %v325
        %v496 = vpop.f32.mrb[0].mxu0
        %v497 = vadd.f32 0.0, %v496
        %v498 = vpop.f32.mrb[0].mxu0
        %499 = vmatprep.mubr.f32.mxu0 0.0
        %500 = vmatmul.mubr.f32.gmra.mrb[0].mxu0 %v328
        %v501 = vpop.f32.mrb[0].mxu0
        %v502 = vadd.f32 0.0, %v501
        %v503 = vpop.f32.mrb[0].mxu0
        %504 = vmatprep.mubr.f32.mxu0 0.0
        %505 = vmatmul.mubr.f32.gmra.mrb[0].mxu0 %v331
        %v506 = vpop.f32.mrb[0].mxu0
        %v507 = vadd.f32 0.0, %v506
        %v508 = vpop.f32.mrb[0].mxu0
        %509 = vmatprep.mubr.f32.mxu0 0.0
        %510 = vmatmul.mubr.f32.gmra.mrb[0].mxu0 %v334
        %v511 = vpop.f32.mrb[0].mxu0
        %v512 = vadd.f32 0.0, %v511
        %v513 = vpop.f32.mrb[0].mxu0
        %514 = vmatprep.mubr.f32.mxu0 0.0
        %515 = vmatmul.mubr.f32.gmra.mrb[0].mxu0 %v337
        %v516 = vpop.f32.mrb[0].mxu0
        %v517 = vadd.f32 0.0, %v516
        %v518 = vpop.f32.mrb[0].mxu0
        %519 = vmatprep.mubr.f32.mxu0 0.0
        %520 = vmatmul.mubr.f32.gmra.mrb[0].mxu0 %v340
        %v521 = vpop.f32.mrb[0].mxu0
        %v522 = vadd.f32 0.0, %v521
        %v523 = vpop.f32.mrb[0].mxu0
        %524 = vmatprep.mubr.f32.mxu0 0.0
        %525 = vmatmul.mubr.f32.gmra.mrb[0].mxu0 %v343
        %v526 = vpop.f32.mrb[0].mxu0
        %v527 = vadd.f32 0.0, %v526
        %v528 = vpop.f32.mrb[0].mxu0
        %529 = vmatprep.mubr.f32.mxu0 0.0
        %530 = vmatmul.mubr.f32.gmra.mrb[0].mxu0 %v346
        %v531 = vpop.f32.mrb[0].mxu0
        %v532 = vadd.f32 0.0, %v531
        %v533 = vpop.f32.mrb[0].mxu0
        %534 = vmatprep.mubr.f32.mxu0 0.0
        %535 = vmatmul.mubr.f32.gmra.mrb[0].mxu0 %v349
        %v536 = vpop.f32.mrb[0].mxu0
        %v537 = vadd.f32 0.0, %v536
        %v538 = vpop.f32.mrb[0].mxu0
        %539 = vmatprep.mubr.f32.mxu0 0.0
        %540 = vmatmul.mubr.f32.gmra.mrb[0].mxu0 %v352
        %v541 = vpop.f32.mrb[0].mxu0
        %v542 = vadd.f32 0.0, %v541
        %v543 = vpop.f32.mrb[0].mxu0
        %544 = vmatprep.mubr.f32.mxu0 0.0
        %545 = vmatmul.mubr.f32.gmra.mrb[0].mxu0 %v355
        %v546 = vpop.f32.mrb[0].mxu0
        %v547 = vadd.f32 0.0, %v546
        %v548 = vpop.f32.mrb[0].mxu0
        %549 = vmatprep.mubr.f32.mxu0 0.0
        %550 = vmatmul.mubr.f32.gmra.mrb[0].mxu0 %v358
        %v551 = vpop.f32.mrb[0].mxu0
        %v552 = vadd.f32 0.0, %v551
        %v553 = vpop.f32.mrb[0].mxu0
        %554 = vmatprep.mubr.f32.mxu0 0.0
        %555 = vmatmul.mubr.f32.gmra.mrb[0].mxu0 %v361
        %v556 = vpop.f32.mrb[0].mxu0
        %v557 = vadd.f32 0.0, %v556
        %v558 = vpop.f32.mrb[0].mxu0
        %559 = vmatprep.mubr.f32.mxu0 0.0
        %560 = vmatmul.mubr.f32.gmra.mrb[0].mxu0 %v364
        %v561 = vpop.f32.mrb[0].mxu0
        %v562 = vadd.f32 0.0, %v561
        %v563 = vpop.f32.mrb[0].mxu0
        %564 = vmatprep.mubr.f32.mxu0 0.0
        %565 = vmatmul.mubr.f32.gmra.mrb[0].mxu0 %v367
        %v566 = vpop.f32.mrb[0].mxu0
        %v567 = vadd.f32 0.0, %v566
        %v568 = vpop.f32.mrb[0].mxu0
        %569 = vmatprep.mubr.f32.mxu0 0.0
        %570 = vmatmul.mubr.f32.gmra.mrb[0].mxu0 %v370
        %v571 = vpop.f32.mrb[0].mxu0
        %v572 = vadd.f32 0.0, %v571
        %v573 = vpop.f32.mrb[0].mxu0
        %574 = vmatprep.mubr.f32.mxu0 0.0
        %575 = vmatmul.mubr.f32.gmra.mrb[0].mxu0 %v373
        %v576 = vpop.f32.mrb[0].mxu0
        %v577 = vadd.f32 0.0, %v576
        %v578 = vpop.f32.mrb[0].mxu0
        %579 = vmatprep.mubr.f32.mxu0 0.0
        %580 = vmatmul.mubr.f32.gmra.mrb[0].mxu0 %v376
        %v581 = vpop.f32.mrb[0].mxu0
        %v582 = vadd.f32 0.0, %v581
        %v583 = vpop.f32.mrb[0].mxu0
        %584 = vmatprep.mubr.f32.mxu0 0.0
        %585 = vmatmul.mubr.f32.gmra.mrb[0].mxu0 %v379
        %v586 = vpop.f32.mrb[0].mxu0
        %v587 = vadd.f32 0.0, %v586
        %v588 = vpop.f32.mrb[0].mxu0
        %589 = vmatprep.mubr.f32.mxu0 0.0
        %590 = vmatmul.mubr.f32.gmra.mrb[0].mxu0 %v382
        %v591 = vpop.f32.mrb[0].mxu0
        %v592 = vadd.f32 0.0, %v591
        %v593 = vpop.f32.mrb[0].mxu0
        %594 = vmatprep.mubr.f32.mxu0 0.0
        %595 = vmatmul.mubr.f32.gmra.mrb[0].mxu0 %v385
        %v596 = vpop.f32.mrb[0].mxu0
        %v597 = vadd.f32 0.0, %v596
        %v598 = vpop.f32.mrb[0].mxu0
        %599 = vmatprep.mubr.f32.mxu0 0.0
        %600 = vmatmul.mubr.f32.gmra.mrb[0].mxu0 %v388
        %v601 = vpop.f32.mrb[0].mxu0
        %v602 = vadd.f32 0.0, %v601
        %v603 = vpop.f32.mrb[0].mxu0
        %604 = vmatprep.mubr.f32.mxu0 0.0
        %605 = vmatmul.mubr.f32.gmra.mrb[0].mxu0 %v391
        %v606 = vpop.f32.mrb[0].mxu0
        %v607 = vadd.f32 0.0, %v606
        %v608 = vpop.f32.mrb[0].mxu0
        %609 = vmatprep.mubr.f32.mxu0 0.0
        %610 = vmatmul.mubr.f32.gmra.mrb[0].mxu0 %v394
        %v611 = vpop.f32.mrb[0].mxu0
        %v612 = vadd.f32 0.0, %v611
        %v613 = vpop.f32.mrb[0].mxu0
        %614 = vmatprep.mubr.f32.mxu0 0.0
        %615 = vmatmul.mubr.f32.gmra.mrb[0].mxu0 %v397
        %v616 = vpop.f32.mrb[0].mxu0
        %v617 = vadd.f32 0.0, %v616
        %v618 = vpop.f32.mrb[0].mxu0
        %619 = vmatprep.mubr.f32.mxu0 0.0
        %620 = vmatmul.mubr.f32.gmra.mrb[0].mxu0 %v400
        %v621 = vpop.f32.mrb[0].mxu0
        %v622 = vadd.f32 0.0, %v621
        %v623 = vpop.f32.mrb[0].mxu0
        %624 = vmatprep.mubr.f32.mxu0 0.0
        %625 = vmatmul.mubr.f32.gmra.mrb[0].mxu0 %v403
        %v626 = vpop.f32.mrb[0].mxu0
        %v627 = vadd.f32 0.0, %v626
        %v628 = vpop.f32.mrb[0].mxu0
        %629 = vdwg.mxu0
        %v630 = vmul.f32 %v472, %v472
        %v631 = vmul.f32 %v477, %v477
        %v632 = vmul.f32 %v482, %v482
        %v633 = vmul.f32 %v487, %v487
        %v634 = vmul.f32 %v492, %v492
        %v635 = vmul.f32 %v497, %v497
        %v636 = vmul.f32 %v502, %v502
        %v637 = vmul.f32 %v507, %v507
        %v638 = vmul.f32 %v512, %v512
        %v639 = vmul.f32 %v517, %v517
        %v640 = vmul.f32 %v522, %v522
        %v641 = vmul.f32 %v527, %v527
        %v642 = vmul.f32 %v532, %v532
        %v643 = vmul.f32 %v537, %v537
        %v644 = vmul.f32 %v542, %v542
        %v645 = vmul.f32 %v547, %v547
        %v646 = vmul.f32 %v552, %v552
        %v647 = vmul.f32 %v557, %v557
        %v648 = vmul.f32 %v562, %v562
        %v649 = vmul.f32 %v567, %v567
        %v650 = vmul.f32 %v572, %v572
        %v651 = vmul.f32 %v577, %v577
        %v652 = vmul.f32 %v582, %v582
        %v653 = vmul.f32 %v587, %v587
        %v654 = vmul.f32 %v592, %v592
        %v655 = vmul.f32 %v597, %v597
        %v656 = vmul.f32 %v602, %v602
        %v657 = vmul.f32 %v607, %v607
        %v658 = vmul.f32 %v612, %v612
        %v659 = vmul.f32 %v617, %v617
        %v660 = vmul.f32 %v622, %v622
        %v661 = vmul.f32 %v627, %v627
        %v662 = vmul.f32 %v630, %v630
        %v663 = vmul.f32 %v631, %v631
        %v664 = vmul.f32 %v632, %v632
        %v665 = vmul.f32 %v633, %v633
        %v666 = vmul.f32 %v634, %v634
        %v667 = vmul.f32 %v635, %v635
        %v668 = vmul.f32 %v636, %v636
        %v669 = vmul.f32 %v637, %v637
        %v670 = vmul.f32 %v638, %v638
        %v671 = vmul.f32 %v639, %v639
        %v672 = vmul.f32 %v640, %v640
        %v673 = vmul.f32 %v641, %v641
        %v674 = vmul.f32 %v642, %v642
        %v675 = vmul.f32 %v643, %v643
        %v676 = vmul.f32 %v644, %v644
        %v677 = vmul.f32 %v645, %v645
        %v678 = vmul.f32 %v646, %v646
        %v679 = vmul.f32 %v647, %v647
        %v680 = vmul.f32 %v648, %v648
        %v681 = vmul.f32 %v649, %v649
        %v682 = vmul.f32 %v650, %v650
        %v683 = vmul.f32 %v651, %v651
        %v684 = vmul.f32 %v652, %v652
        %v685 = vmul.f32 %v653, %v653
        %v686 = vmul.f32 %v654, %v654
        %v687 = vmul.f32 %v655, %v655
        %v688 = vmul.f32 %v656, %v656
        %v689 = vmul.f32 %v657, %v657
        %v690 = vmul.f32 %v658, %v658
        %v691 = vmul.f32 %v659, %v659
        %v692 = vmul.f32 %v660, %v660
        %v693 = vmul.f32 %v661, %v661
        %v694 = vmul.f32 %v662, %v662
        %v695 = vmul.f32 %v663, %v663
        %v696 = vmul.f32 %v664, %v664
        %v697 = vmul.f32 %v665, %v665
        %v698 = vmul.f32 %v666, %v666
        %v699 = vmul.f32 %v667, %v667
        %v700 = vmul.f32 %v668, %v668
        %v701 = vmul.f32 %v669, %v669
        %v702 = vmul.f32 %v670, %v670
        %v703 = vmul.f32 %v671, %v671
        %v704 = vmul.f32 %v672, %v672
        %v705 = vmul.f32 %v673, %v673
        %v706 = vmul.f32 %v674, %v674
        %v707 = vmul.f32 %v675, %v675
        %v708 = vmul.f32 %v676, %v676
        %v709 = vmul.f32 %v677, %v677
        %v710 = vmul.f32 %v678, %v678
        %v711 = vmul.f32 %v679, %v679
        %v712 = vmul.f32 %v680, %v680
        %v713 = vmul.f32 %v681, %v681
        %v714 = vmul.f32 %v682, %v682
        %v715 = vmul.f32 %v683, %v683
        %v716 = vmul.f32 %v684, %v684
        %v717 = vmul.f32 %v685, %v685
        %v718 = vmul.f32 %v686, %v686
        %v719 = vmul.f32 %v687, %v687
        %v720 = vmul.f32 %v688, %v688
        %v721 = vmul.f32 %v689, %v689
        %v722 = vmul.f32 %v690, %v690
        %v723 = vmul.f32 %v691, %v691
        %v724 = vmul.f32 %v692, %v692
        %v725 = vmul.f32 %v693, %v693
        %v726 = vld [vmem:[%s269] sm:$0xff]
        %v727 = vld [vmem:[%s269 + $0x8] sm:$0xff]
        %v728 = vld [vmem:[%s269 + $0x10] sm:$0xff]
        %v729 = vld [vmem:[%s269 + $0x18] sm:$0xff]
        %v730 = vld [vmem:[%s269 + $0x20] sm:$0xff]
        %v731 = vld [vmem:[%s269 + $0x28] sm:$0xff]
        %v732 = vld [vmem:[%s269 + $0x30] sm:$0xff]
        %v733 = vld [vmem:[%s269 + $0x38] sm:$0xff]
        %v734 = vld [vmem:[%s269 + $0x40] sm:$0xff]
        %v735 = vld [vmem:[%s269 + $0x48] sm:$0xff]
        %v736 = vld [vmem:[%s269 + $0x50] sm:$0xff]
        %v737 = vld [vmem:[%s269 + $0x58] sm:$0xff]
        %v738 = vld [vmem:[%s269 + $0x60] sm:$0xff]
        %v739 = vld [vmem:[%s269 + $0x68] sm:$0xff]
        %v740 = vld [vmem:[%s269 + $0x70] sm:$0xff]
        %v741 = vld [vmem:[%s269 + $0x78] sm:$0xff]
        %742 = vmatprep.subr.mxu0 0.0
        %743 = vmatpush1.msra.mxu0 %v726
        %744 = vmatprep.subr.mxu0 0.0
        %745 = vmatpush1.msra.mxu0 %v727
        %746 = vmatprep.subr.mxu0 0.0
        %747 = vmatpush1.msra.mxu0 %v728
        %748 = vmatprep.subr.mxu0 0.0
        %749 = vmatpush1.msra.mxu0 %v729
        %750 = vmatprep.subr.mxu0 0.0
        %751 = vmatpush1.msra.mxu0 %v730
        %752 = vmatprep.subr.mxu0 0.0
        %753 = vmatpush1.msra.mxu0 %v731
        %754 = vmatprep.subr.mxu0 0.0
        %755 = vmatpush1.msra.mxu0 %v732
        %756 = vmatprep.subr.mxu0 0.0
        %757 = vmatpush1.msra.mxu0 %v733
        %758 = vmatprep.subr.mxu0 0.0
        %759 = vmatpush1.msra.mxu0 %v734
        %760 = vmatprep.subr.mxu0 0.0
        %761 = vmatpush1.msra.mxu0 %v735
        %762 = vmatprep.subr.mxu0 0.0
        %763 = vmatpush1.msra.mxu0 %v736
        %764 = vmatprep.subr.mxu0 0.0
        %765 = vmatpush1.msra.mxu0 %v737
        %766 = vmatprep.subr.mxu0 0.0
        %767 = vmatpush1.msra.mxu0 %v738
        %768 = vmatprep.subr.mxu0 0.0
        %769 = vmatpush1.msra.mxu0 %v739
        %770 = vmatprep.subr.mxu0 0.0
        %771 = vmatpush1.msra.mxu0 %v740
        %772 = vmatprep.subr.mxu0 0.0
        %773 = vmatpush1.msra.mxu0 %v741
        %774 = vmatprep.subr.mxu0 0.0
        %775 = vmatpush1.msra.mxu0 0.0
        %776 = vmatprep.subr.mxu0 0.0
        %777 = vmatpush1.msra.mxu0 0.0
        %778 = vmatprep.subr.mxu0 0.0
        %779 = vmatpush1.msra.mxu0 0.0
        %780 = vmatprep.subr.mxu0 0.0
        %781 = vmatpush1.msra.mxu0 0.0
        %782 = vmatprep.subr.mxu0 0.0
        %783 = vmatpush1.msra.mxu0 0.0
        %784 = vmatprep.subr.mxu0 0.0
        %785 = vmatpush1.msra.mxu0 0.0
        %786 = vmatprep.subr.mxu0 0.0
        %787 = vmatpush1.msra.mxu0 0.0
        %788 = vmatprep.subr.mxu0 0.0
        %789 = vmatpush1.msra.mxu0 0.0
        %790 = vmatprep.subr.mxu0 0.0
        %791 = vmatpush1.msra.mxu0 0.0
        %792 = vmatprep.subr.mxu0 0.0
        %793 = vmatpush1.msra.mxu0 0.0
        %794 = vmatprep.subr.mxu0 0.0
        %795 = vmatpush1.msra.mxu0 0.0
        %796 = vmatprep.subr.mxu0 0.0
        %797 = vmatpush1.msra.mxu0 0.0
        %798 = vmatprep.subr.mxu0 0.0
        %799 = vmatpush1.msra.mxu0 0.0
        %800 = vmatprep.subr.mxu0 0.0
        %801 = vmatpush1.msra.mxu0 0.0
        %802 = vmatprep.subr.mxu0 0.0
        %803 = vmatpush1.msra.mxu0 0.0
        %804 = vmatprep.subr.mxu0 0.0
        %805 = vmatpush1.msra.mxu0 0.0
        %806 = vmatprep.mubr.f32.mxu0 0.0
        %807 = vmatmul.mubr.f32.gmra.mrb[0].mxu0 %v694
        %v808 = vpop.f32.mrb[0].mxu0
        %v809 = vadd.f32 0.0, %v808
        %v810 = vpop.f32.mrb[0].mxu0
        %811 = vmatprep.mubr.f32.mxu0 0.0
        %812 = vmatmul.mubr.f32.gmra.mrb[0].mxu0 %v695
        %v813 = vpop.f32.mrb[0].mxu0
        %v814 = vadd.f32 0.0, %v813
        %v815 = vpop.f32.mrb[0].mxu0
        %816 = vmatprep.mubr.f32.mxu0 0.0
        %817 = vmatmul.mubr.f32.gmra.mrb[0].mxu0 %v696
        %v818 = vpop.f32.mrb[0].mxu0
        %v819 = vadd.f32 0.0, %v818
        %v820 = vpop.f32.mrb[0].mxu0
        %821 = vmatprep.mubr.f32.mxu0 0.0
        %822 = vmatmul.mubr.f32.gmra.mrb[0].mxu0 %v697
        %v823 = vpop.f32.mrb[0].mxu0
        %v824 = vadd.f32 0.0, %v823
        %v825 = vpop.f32.mrb[0].mxu0
        %826 = vmatprep.mubr.f32.mxu0 0.0
        %827 = vmatmul.mubr.f32.gmra.mrb[0].mxu0 %v698
        %v828 = vpop.f32.mrb[0].mxu0
        %v829 = vadd.f32 0.0, %v828
        %v830 = vpop.f32.mrb[0].mxu0
        %831 = vmatprep.mubr.f32.mxu0 0.0
        %832 = vmatmul.mubr.f32.gmra.mrb[0].mxu0 %v699
        %v833 = vpop.f32.mrb[0].mxu0
        %v834 = vadd.f32 0.0, %v833
        %v835 = vpop.f32.mrb[0].mxu0
        %836 = vmatprep.mubr.f32.mxu0 0.0
        %837 = vmatmul.mubr.f32.gmra.mrb[0].mxu0 %v700
        %v838 = vpop.f32.mrb[0].mxu0
        %v839 = vadd.f32 0.0, %v838
        %v840 = vpop.f32.mrb[0].mxu0
        %841 = vmatprep.mubr.f32.mxu0 0.0
        %842 = vmatmul.mubr.f32.gmra.mrb[0].mxu0 %v701
        %v843 = vpop.f32.mrb[0].mxu0
        %v844 = vadd.f32 0.0, %v843
        %v845 = vpop.f32.mrb[0].mxu0
        %846 = vmatprep.mubr.f32.mxu0 0.0
        %847 = vmatmul.mubr.f32.gmra.mrb[0].mxu0 %v702
        %v848 = vpop.f32.mrb[0].mxu0
        %v849 = vadd.f32 0.0, %v848
        %v850 = vpop.f32.mrb[0].mxu0
        %851 = vmatprep.mubr.f32.mxu0 0.0
        %852 = vmatmul.mubr.f32.gmra.mrb[0].mxu0 %v703
        %v853 = vpop.f32.mrb[0].mxu0
        %v854 = vadd.f32 0.0, %v853
        %v855 = vpop.f32.mrb[0].mxu0
        %856 = vmatprep.mubr.f32.mxu0 0.0
        %857 = vmatmul.mubr.f32.gmra.mrb[0].mxu0 %v704
        %v858 = vpop.f32.mrb[0].mxu0
        %v859 = vadd.f32 0.0, %v858
        %v860 = vpop.f32.mrb[0].mxu0
        %861 = vmatprep.mubr.f32.mxu0 0.0
        %862 = vmatmul.mubr.f32.gmra.mrb[0].mxu0 %v705
        %v863 = vpop.f32.mrb[0].mxu0
        %v864 = vadd.f32 0.0, %v863
        %v865 = vpop.f32.mrb[0].mxu0
        %866 = vmatprep.mubr.f32.mxu0 0.0
        %867 = vmatmul.mubr.f32.gmra.mrb[0].mxu0 %v706
        %v868 = vpop.f32.mrb[0].mxu0
        %v869 = vadd.f32 0.0, %v868
        %v870 = vpop.f32.mrb[0].mxu0
        %871 = vmatprep.mubr.f32.mxu0 0.0
        %872 = vmatmul.mubr.f32.gmra.mrb[0].mxu0 %v707
        %v873 = vpop.f32.mrb[0].mxu0
        %v874 = vadd.f32 0.0, %v873
        %v875 = vpop.f32.mrb[0].mxu0
        %876 = vmatprep.mubr.f32.mxu0 0.0
        %877 = vmatmul.mubr.f32.gmra.mrb[0].mxu0 %v708
        %v878 = vpop.f32.mrb[0].mxu0
        %v879 = vadd.f32 0.0, %v878
        %v880 = vpop.f32.mrb[0].mxu0
        %881 = vmatprep.mubr.f32.mxu0 0.0
        %882 = vmatmul.mubr.f32.gmra.mrb[0].mxu0 %v709
        %v883 = vpop.f32.mrb[0].mxu0
        %v884 = vadd.f32 0.0, %v883
        %v885 = vpop.f32.mrb[0].mxu0
        %886 = vmatprep.mubr.f32.mxu0 0.0
        %887 = vmatmul.mubr.f32.gmra.mrb[0].mxu0 %v710
        %v888 = vpop.f32.mrb[0].mxu0
        %v889 = vadd.f32 0.0, %v888
        %v890 = vpop.f32.mrb[0].mxu0
        %891 = vmatprep.mubr.f32.mxu0 0.0
        %892 = vmatmul.mubr.f32.gmra.mrb[0].mxu0 %v711
        %v893 = vpop.f32.mrb[0].mxu0
        %v894 = vadd.f32 0.0, %v893
        %v895 = vpop.f32.mrb[0].mxu0
        %896 = vmatprep.mubr.f32.mxu0 0.0
        %897 = vmatmul.mubr.f32.gmra.mrb[0].mxu0 %v712
        %v898 = vpop.f32.mrb[0].mxu0
        %v899 = vadd.f32 0.0, %v898
        %v900 = vpop.f32.mrb[0].mxu0
        %901 = vmatprep.mubr.f32.mxu0 0.0
        %902 = vmatmul.mubr.f32.gmra.mrb[0].mxu0 %v713
        %v903 = vpop.f32.mrb[0].mxu0
        %v904 = vadd.f32 0.0, %v903
        %v905 = vpop.f32.mrb[0].mxu0
        %906 = vmatprep.mubr.f32.mxu0 0.0
        %907 = vmatmul.mubr.f32.gmra.mrb[0].mxu0 %v714
        %v908 = vpop.f32.mrb[0].mxu0
        %v909 = vadd.f32 0.0, %v908
        %v910 = vpop.f32.mrb[0].mxu0
        %911 = vmatprep.mubr.f32.mxu0 0.0
        %912 = vmatmul.mubr.f32.gmra.mrb[0].mxu0 %v715
        %v913 = vpop.f32.mrb[0].mxu0
        %v914 = vadd.f32 0.0, %v913
        %v915 = vpop.f32.mrb[0].mxu0
        %916 = vmatprep.mubr.f32.mxu0 0.0
        %917 = vmatmul.mubr.f32.gmra.mrb[0].mxu0 %v716
        %v918 = vpop.f32.mrb[0].mxu0
        %v919 = vadd.f32 0.0, %v918
        %v920 = vpop.f32.mrb[0].mxu0
        %921 = vmatprep.mubr.f32.mxu0 0.0
        %922 = vmatmul.mubr.f32.gmra.mrb[0].mxu0 %v717
        %v923 = vpop.f32.mrb[0].mxu0
        %v924 = vadd.f32 0.0, %v923
        %v925 = vpop.f32.mrb[0].mxu0
        %926 = vmatprep.mubr.f32.mxu0 0.0
        %927 = vmatmul.mubr.f32.gmra.mrb[0].mxu0 %v718
        %v928 = vpop.f32.mrb[0].mxu0
        %v929 = vadd.f32 0.0, %v928
        %v930 = vpop.f32.mrb[0].mxu0
        %931 = vmatprep.mubr.f32.mxu0 0.0
        %932 = vmatmul.mubr.f32.gmra.mrb[0].mxu0 %v719
        %v933 = vpop.f32.mrb[0].mxu0
        %v934 = vadd.f32 0.0, %v933
        %v935 = vpop.f32.mrb[0].mxu0
        %936 = vmatprep.mubr.f32.mxu0 0.0
        %937 = vmatmul.mubr.f32.gmra.mrb[0].mxu0 %v720
        %v938 = vpop.f32.mrb[0].mxu0
        %v939 = vadd.f32 0.0, %v938
        %v940 = vpop.f32.mrb[0].mxu0
        %941 = vmatprep.mubr.f32.mxu0 0.0
        %942 = vmatmul.mubr.f32.gmra.mrb[0].mxu0 %v721
        %v943 = vpop.f32.mrb[0].mxu0
        %v944 = vadd.f32 0.0, %v943
        %v945 = vpop.f32.mrb[0].mxu0
        %946 = vmatprep.mubr.f32.mxu0 0.0
        %947 = vmatmul.mubr.f32.gmra.mrb[0].mxu0 %v722
        %v948 = vpop.f32.mrb[0].mxu0
        %v949 = vadd.f32 0.0, %v948
        %v950 = vpop.f32.mrb[0].mxu0
        %951 = vmatprep.mubr.f32.mxu0 0.0
        %952 = vmatmul.mubr.f32.gmra.mrb[0].mxu0 %v723
        %v953 = vpop.f32.mrb[0].mxu0
        %v954 = vadd.f32 0.0, %v953
        %v955 = vpop.f32.mrb[0].mxu0
        %956 = vmatprep.mubr.f32.mxu0 0.0
        %957 = vmatmul.mubr.f32.gmra.mrb[0].mxu0 %v724
        %v958 = vpop.f32.mrb[0].mxu0
        %v959 = vadd.f32 0.0, %v958
        %v960 = vpop.f32.mrb[0].mxu0
        %961 = vmatprep.mubr.f32.mxu0 0.0
        %962 = vmatmul.mubr.f32.gmra.mrb[0].mxu0 %v725
        %v963 = vpop.f32.mrb[0].mxu0
        %v964 = vadd.f32 0.0, %v963
        %v965 = vpop.f32.mrb[0].mxu0
        %966 = vdwg.mxu0
        %p967 = scmp.eq.s32.totalorder %s22, 0
        // Predicated region
        $region71: #{tpu_custom_call.1} parent=65 // pred_check
          %p968 = pneg %p967
        $region72: #{tpu_custom_call.1} parent=65 // pred_check_branch
          %970 = sbr.rel (%p968) target = $region74
        $region73: #{tpu_custom_call.1} parent=65 // pred_region
          %971 = vst [vmem:[%s258] sm:$0xff] %v809
          %972 = vst [vmem:[%s258 + $0x8] sm:$0xff] %v814
          %973 = vst [vmem:[%s258 + $0x10] sm:$0xff] %v819
          %974 = vst [vmem:[%s258 + $0x18] sm:$0xff] %v824
          %975 = vst [vmem:[%s258 + $0x20] sm:$0xff] %v829
          %976 = vst [vmem:[%s258 + $0x28] sm:$0xff] %v834
          %977 = vst [vmem:[%s258 + $0x30] sm:$0xff] %v839
          %978 = vst [vmem:[%s258 + $0x38] sm:$0xff] %v844
          %979 = vst [vmem:[%s258 + $0x40] sm:$0xff] %v849
          %980 = vst [vmem:[%s258 + $0x48] sm:$0xff] %v854
          %981 = vst [vmem:[%s258 + $0x50] sm:$0xff] %v859
          %982 = vst [vmem:[%s258 + $0x58] sm:$0xff] %v864
          %983 = vst [vmem:[%s258 + $0x60] sm:$0xff] %v869
          %984 = vst [vmem:[%s258 + $0x68] sm:$0xff] %v874
          %985 = vst [vmem:[%s258 + $0x70] sm:$0xff] %v879
          %986 = vst [vmem:[%s258 + $0x78] sm:$0xff] %v884
          %987 = vst [vmem:[%s258 + $0x80] sm:$0xff] %v889
          %988 = vst [vmem:[%s258 + $0x88] sm:$0xff] %v894
          %989 = vst [vmem:[%s258 + $0x90] sm:$0xff] %v899
          %990 = vst [vmem:[%s258 + $0x98] sm:$0xff] %v904
          %991 = vst [vmem:[%s258 + $0xa0] sm:$0xff] %v909
          %992 = vst [vmem:[%s258 + $0xa8] sm:$0xff] %v914
          %993 = vst [vmem:[%s258 + $0xb0] sm:$0xff] %v919
          %994 = vst [vmem:[%s258 + $0xb8] sm:$0xff] %v924
          %995 = vst [vmem:[%s258 + $0xc0] sm:$0xff] %v929
          %996 = vst [vmem:[%s258 + $0xc8] sm:$0xff] %v934
          %997 = vst [vmem:[%s258 + $0xd0] sm:$0xff] %v939
          %998 = vst [vmem:[%s258 + $0xd8] sm:$0xff] %v944
          %999 = vst [vmem:[%s258 + $0xe0] sm:$0xff] %v949
          %1000 = vst [vmem:[%s258 + $0xe8] sm:$0xff] %v954
          %1001 = vst [vmem:[%s258 + $0xf0] sm:$0xff] %v959
          %1002 = vst [vmem:[%s258 + $0xf8] sm:$0xff] %v964
        $region74: #{tpu_custom_call.1} parent=65 // pred_fallthru
          _
        %p1003 = scmp.gt.s32.totalorder %s22, 0
        // Predicated region
        $region75: #{tpu_custom_call.1} parent=65 // pred_check
          %p1004 = pneg %p1003
        $region76: #{tpu_custom_call.1} parent=65 // pred_check_branch
          %1006 = sbr.rel (%p1004) target = $region78
        $region77: #{tpu_custom_call.1} parent=65 // pred_region
          %v1007 = vld [vmem:[%s258] sm:$0xff]
          %v1008 = vld [vmem:[%s258 + $0x8] sm:$0xff]
          %v1009 = vld [vmem:[%s258 + $0x10] sm:$0xff]
          %v1010 = vld [vmem:[%s258 + $0x18] sm:$0xff]
          %v1011 = vld [vmem:[%s258 + $0x20] sm:$0xff]
          %v1012 = vld [vmem:[%s258 + $0x28] sm:$0xff]
          %v1013 = vld [vmem:[%s258 + $0x30] sm:$0xff]
          %v1014 = vld [vmem:[%s258 + $0x38] sm:$0xff]
          %v1015 = vld [vmem:[%s258 + $0x40] sm:$0xff]
          %v1016 = vld [vmem:[%s258 + $0x48] sm:$0xff]
          %v1017 = vld [vmem:[%s258 + $0x50] sm:$0xff]
          %v1018 = vld [vmem:[%s258 + $0x58] sm:$0xff]
          %v1019 = vld [vmem:[%s258 + $0x60] sm:$0xff]
          %v1020 = vld [vmem:[%s258 + $0x68] sm:$0xff]
          %v1021 = vld [vmem:[%s258 + $0x70] sm:$0xff]
          %v1022 = vld [vmem:[%s258 + $0x78] sm:$0xff]
          %v1023 = vld [vmem:[%s258 + $0x80] sm:$0xff]
          %v1024 = vld [vmem:[%s258 + $0x88] sm:$0xff]
          %v1025 = vld [vmem:[%s258 + $0x90] sm:$0xff]
          %v1026 = vld [vmem:[%s258 + $0x98] sm:$0xff]
          %v1027 = vld [vmem:[%s258 + $0xa0] sm:$0xff]
          %v1028 = vld [vmem:[%s258 + $0xa8] sm:$0xff]
          %v1029 = vld [vmem:[%s258 + $0xb0] sm:$0xff]
          %v1030 = vld [vmem:[%s258 + $0xb8] sm:$0xff]
          %v1031 = vld [vmem:[%s258 + $0xc0] sm:$0xff]
          %v1032 = vld [vmem:[%s258 + $0xc8] sm:$0xff]
          %v1033 = vld [vmem:[%s258 + $0xd0] sm:$0xff]
          %v1034 = vld [vmem:[%s258 + $0xd8] sm:$0xff]
          %v1035 = vld [vmem:[%s258 + $0xe0] sm:$0xff]
          %v1036 = vld [vmem:[%s258 + $0xe8] sm:$0xff]
          %v1037 = vld [vmem:[%s258 + $0xf0] sm:$0xff]
          %v1038 = vld [vmem:[%s258 + $0xf8] sm:$0xff]
          %v1039 = vadd.f32 %v1007, %v809
          %v1040 = vadd.f32 %v1008, %v814
          %v1041 = vadd.f32 %v1009, %v819
          %v1042 = vadd.f32 %v1010, %v824
          %v1043 = vadd.f32 %v1011, %v829
          %v1044 = vadd.f32 %v1012, %v834
          %v1045 = vadd.f32 %v1013, %v839
          %v1046 = vadd.f32 %v1014, %v844
          %v1047 = vadd.f32 %v1015, %v849
          %v1048 = vadd.f32 %v1016, %v854
          %v1049 = vadd.f32 %v1017, %v859
          %v1050 = vadd.f32 %v1018, %v864
          %v1051 = vadd.f32 %v1019, %v869
          %v1052 = vadd.f32 %v1020, %v874
          %v1053 = vadd.f32 %v1021, %v879
          %v1054 = vadd.f32 %v1022, %v884
          %v1055 = vadd.f32 %v1023, %v889
          %v1056 = vadd.f32 %v1024, %v894
          %v1057 = vadd.f32 %v1025, %v899
          %v1058 = vadd.f32 %v1026, %v904
          %v1059 = vadd.f32 %v1027, %v909
          %v1060 = vadd.f32 %v1028, %v914
          %v1061 = vadd.f32 %v1029, %v919
          %v1062 = vadd.f32 %v1030, %v924
          %v1063 = vadd.f32 %v1031, %v929
          %v1064 = vadd.f32 %v1032, %v934
          %v1065 = vadd.f32 %v1033, %v939
          %v1066 = vadd.f32 %v1034, %v944
          %v1067 = vadd.f32 %v1035, %v949
          %v1068 = vadd.f32 %v1036, %v954
          %v1069 = vadd.f32 %v1037, %v959
          %v1070 = vadd.f32 %v1038, %v964
          %1071 = vst [vmem:[%s258] sm:$0xff] %v1039
          %1072 = vst [vmem:[%s258 + $0x8] sm:$0xff] %v1040
          %1073 = vst [vmem:[%s258 + $0x10] sm:$0xff] %v1041
          %1074 = vst [vmem:[%s258 + $0x18] sm:$0xff] %v1042
          %1075 = vst [vmem:[%s258 + $0x20] sm:$0xff] %v1043
          %1076 = vst [vmem:[%s258 + $0x28] sm:$0xff] %v1044
          %1077 = vst [vmem:[%s258 + $0x30] sm:$0xff] %v1045
          %1078 = vst [vmem:[%s258 + $0x38] sm:$0xff] %v1046
          %1079 = vst [vmem:[%s258 + $0x40] sm:$0xff] %v1047
          %1080 = vst [vmem:[%s258 + $0x48] sm:$0xff] %v1048
          %1081 = vst [vmem:[%s258 + $0x50] sm:$0xff] %v1049
          %1082 = vst [vmem:[%s258 + $0x58] sm:$0xff] %v1050
          %1083 = vst [vmem:[%s258 + $0x60] sm:$0xff] %v1051
          %1084 = vst [vmem:[%s258 + $0x68] sm:$0xff] %v1052
          %1085 = vst [vmem:[%s258 + $0x70] sm:$0xff] %v1053
          %1086 = vst [vmem:[%s258 + $0x78] sm:$0xff] %v1054
          %1087 = vst [vmem:[%s258 + $0x80] sm:$0xff] %v1055
          %1088 = vst [vmem:[%s258 + $0x88] sm:$0xff] %v1056
          %1089 = vst [vmem:[%s258 + $0x90] sm:$0xff] %v1057
          %1090 = vst [vmem:[%s258 + $0x98] sm:$0xff] %v1058
          %1091 = vst [vmem:[%s258 + $0xa0] sm:$0xff] %v1059
          %1092 = vst [vmem:[%s258 + $0xa8] sm:$0xff] %v1060
          %1093 = vst [vmem:[%s258 + $0xb0] sm:$0xff] %v1061
          %1094 = vst [vmem:[%s258 + $0xb8] sm:$0xff] %v1062
          %1095 = vst [vmem:[%s258 + $0xc0] sm:$0xff] %v1063
          %1096 = vst [vmem:[%s258 + $0xc8] sm:$0xff] %v1064
          %1097 = vst [vmem:[%s258 + $0xd0] sm:$0xff] %v1065
          %1098 = vst [vmem:[%s258 + $0xd8] sm:$0xff] %v1066
          %1099 = vst [vmem:[%s258 + $0xe0] sm:$0xff] %v1067
          %1100 = vst [vmem:[%s258 + $0xe8] sm:$0xff] %v1068
          %1101 = vst [vmem:[%s258 + $0xf0] sm:$0xff] %v1069
          %1102 = vst [vmem:[%s258 + $0xf8] sm:$0xff] %v1070
        $region78: #{tpu_custom_call.1} parent=65 // pred_fallthru
          _
        %s1103 = sand.u32 %s115, 1
        %s1104 = scalar_lea.sflag [#allocation4], %s1103
        %s1105 = sand.u32 %s115, 1
        %s1106 = smul.addr %s1105, 256
        %s1107 = scalar_lea.vmem [#allocation3], %s1106
        // Predicated region
        $region79: #{tpu_custom_call.1} parent=65 // pred_check
          %p1108 = pneg %p125
        $region80: #{tpu_custom_call.1} parent=65 // pred_check_branch
          %1110 = sbr.rel (%p1108) target = $region82
        $region81: #{tpu_custom_call.1} parent=65 // pred_region
          %s1111 = smul.u32 32, %s21
          %s1113 = ssub.s32 4096, 4096
          %1114 = vsyncadd %s1104, %s1113
          %s1115 = smul.addr %s1111, 128
          %s1116 = scalar_lea.hbm %s3, %s1115
          %s1117 = sshll.u32 %s1107, 4
          %s1118 = int_to_ptr.vmem [resolvable:$true] %s1117
          %1123 = dma.vmem_to_hbm [thread:$0]  %s1118, 4096, %s1116, %s1104, 128, 128, 8
        $region82: #{tpu_custom_call.1} parent=65 // pred_fallthru
          _
      $region66: #{tpu_custom_call.1} parent=5 // pred_fallthru
        _
      %p1124 = scmp.le.s32.totalorder 2, %s12
      // Predicated region
      $region83: #{tpu_custom_call.1} parent=5 // pred_check
        %p1125 = pneg %p1124
      $region84: #{tpu_custom_call.1} parent=5 // pred_check_branch
        %1127 = sbr.rel (%p1125) target = $region86
      $region85: #{tpu_custom_call.1} parent=5 // pred_region
        %s1128 = ssub.s32 %s12, 2
        // Predicated region
        $region87: #{tpu_custom_call.1} parent=85 // pred_check
          %p1129 = pneg %p131
        $region88: #{tpu_custom_call.1} parent=85 // pred_check_branch
          %1131 = sbr.rel (%p1129) target = $region90
        $region89: #{tpu_custom_call.1} parent=85 // pred_region
          %s1132 = sand.u32 %s116, 1
          %s1133 = scalar_lea.sflag [#allocation4], %s1132
          %s1134 = sand.u32 %s116, 1
          %s1135 = smul.addr %s1134, 256
          %s1136 = scalar_lea.vmem [#allocation3], %s1135
          %1137 = dma.done %s1133, 4096
        $region90: #{tpu_custom_call.1} parent=85 // pred_fallthru
          _
      $region86: #{tpu_custom_call.1} parent=5 // pred_fallthru
        _
    $region6: #{tpu_custom_call.1} parent=1 // loop_footer
      %s16 = sadd.s32 1, %s12
    $region7: #{tpu_custom_call.1} parent=1 // loop_footer_branch
      %11 = sbr.rel target = $region3
    $region8: #{tpu_custom_call.1} parent=1 // loop_exit
      _
    %1138 = vsyncpa [#allocation4], 1
    %s1139 = scalar_lea.sflag [#allocation4], 1
    %1140 = vsyncpa %s1139, 1

</llo_original>
